<compile_context>
chip_gen: v7x
topology: tpu7x:2x2x1
jax: 0.10.0
libtpu: 0.0.40
codegen_flags: <defaults>
</compile_context>

<pallas_src>
import jax
import jax.numpy as jnp
from jax.experimental import pallas as pl
from jax.experimental.pallas import tpu as pltpu

_LANES = 128


def _round_up(v, m):
    return ((v + m - 1) // m) * m


def _fdist_kernel(coef_ref, x_ref, o_ref):
    """Elementwise F-distribution fit function (log-space form).

    coef_ref: SMEM (6,) f32 -> [a, d1, d2, c_log, c_x, half_sum]
        c_log    = 0.5 * d1 * log(d1)   (0 when d1 == 0)
        c_x      = 0.5 * d1 - 1.0
        half_sum = 0.5 * (d1 + d2)
    so that
        a/x * sqrt((d1*x)^d1 / (d1*x + d2)^(d1+d2))
          = a * exp(c_log + c_x*log(x) - half_sum*log(d1*x + d2))
    x_ref / o_ref: VMEM (block_rows, 128) tiles.
    """
    a = coef_ref[0]
    d1 = coef_ref[1]
    d2 = coef_ref[2]
    c_log = coef_ref[3]
    c_x = coef_ref[4]
    half_sum = coef_ref[5]

    # Keep the transcendental chain in f32 for accuracy (bf16 EUP on v6e/v7x
    # would halve EUP pushes but needs a precision validation pass first).
    x = x_ref[...].astype(jnp.float32)
    log_x = jnp.log(x)                                   # EUP
    log_den = jnp.log(d1 * x + d2)                       # VPU + EUP
    expo = c_log + c_x * log_x - half_sum * log_den      # VPU FMAs
    o_ref[...] = (a * jnp.exp(expo)).astype(o_ref.dtype)  # EUP + VPU


def fit_function_fdistribution(x, coefficients, *, tile_rows=4096):
    """Apply the F-distribution fit function elementwise to `x`.

    x:            any-shape float array (e.g. NCHW), expected strictly > 0.
    coefficients: shape (4,) float -> [a, d1, d2, x0] (x0 unused in forward).
    tile_rows:    max rows per block; 4096 -> 2 MiB f32 blocks (~8 MiB
                  resident double-buffered), safe on every TPU generation.
    """
    orig_shape = x.shape
    orig_dtype = x.dtype

    coefficients = jnp.asarray(coefficients)
    a = coefficients[0].astype(jnp.float32)
    d1 = coefficients[1].astype(jnp.float32)
    d2 = coefficients[2].astype(jnp.float32)
    # x0 = coefficients[3] is unused in the forward pass (kept for parity).

    # Per-call scalars computed once (tiny XLA ops). Guard d1 == 0: the
    # reference (d1*x)**d1 evaluates to 1 (0**0), i.e. the log constant is 0.
    c_log = jnp.where(d1 != 0.0, 0.5 * d1 * jnp.log(d1), jnp.float32(0.0))
    c_x = 0.5 * d1 - 1.0
    half_sum = 0.5 * (d1 + d2)
    scalars = jnp.stack([a, d1, d2, c_log, c_x, half_sum]).astype(jnp.float32)

    flat = x.reshape(-1)
    n = flat.shape[0]
    n_main = (n // _LANES) * _LANES  # 128-aligned prefix handled by the kernel

    main_flat = None
    if n_main > 0:
        rows = n_main // _LANES
        x2d = (flat if n_main == n else flat[:n_main]).reshape(rows, _LANES)

        # Big blocks to amortize ~0.35us/grid-step, but guarantee >= ~4 grid
        # steps (when the array is big enough) so both v7x TensorCores work.
        if rows <= 8:
            block_rows = rows  # whole (tiny) array as one full-extent block
        else:
            block_rows = max(8, min(tile_rows, _round_up(pl.cdiv(rows, 4), 8)))
        grid = (pl.cdiv(rows, block_rows),)

        in_bytes = rows * _LANES * x2d.dtype.itemsize
        out_bytes = rows * _LANES * jnp.dtype(orig_dtype).itemsize

        out2d = pl.pallas_call(
            _fdist_kernel,
            out_shape=jax.ShapeDtypeStruct((rows, _LANES), orig_dtype),
            grid_spec=pltpu.PrefetchScalarGridSpec(
                num_scalar_prefetch=0,
                grid=grid,
                in_specs=[
                    pl.BlockSpec(memory_space=pltpu.MemorySpace.SMEM),     # scalars
                    pl.BlockSpec((block_rows, _LANES), lambda i: (i, 0)),  # X tile
                ],
                out_specs=pl.BlockSpec((block_rows, _LANES), lambda i: (i, 0)),
            ),
            compiler_params=pltpu.CompilerParams(
                dimension_semantics=("parallel",),
                vmem_limit_bytes=32 * 1024 * 1024,
            ),
            cost_estimate=pl.CostEstimate(
                flops=7 * n_main,
                transcendentals=3 * n_main,
                bytes_accessed=int(in_bytes + out_bytes),
            ),
        )(scalars, x2d)
        main_flat = out2d.reshape(-1)

    if n_main == n:
        out_flat = main_flat
    else:
        # <=127-element ragged tail: plain jnp (negligible), stitched on.
        # Avoids a full-array pad of the input and a full-array slice of the
        # output that a pad-to-128 strategy would require.
        tail = flat[n_main:].astype(jnp.float32)
        tail_out = (
            a * jnp.exp(c_log + c_x * jnp.log(tail) - half_sum * jnp.log(d1 * tail + d2))
        ).astype(orig_dtype)
        out_flat = tail_out if main_flat is None else jnp.concatenate([main_flat, tail_out])

    return out_flat.reshape(orig_shape)


def _reference(x, coefficients):
    a, d1, d2 = coefficients[0], coefficients[1], coefficients[2]
    return a / x * jnp.sqrt((d1 * x) ** d1 / (d1 * x + d2) ** (d1 + d2))


if __name__ == "__main__":
    key = jax.random.PRNGKey(0)
    k_coef, k_x, k_x2 = jax.random.split(key, 3)

    # nn.Parameter init: Uniform(0, 0.1).sample((4,))  ->  [a, d1, d2, x0]
    coefficients = jax.random.uniform(
        k_coef, (4,), dtype=jnp.float32, minval=0.0, maxval=0.1
    )

    # Small NCHW input (2*4*16*16 = 2048 elements, 128-aligned), strictly > 0.
    x = jax.random.uniform(
        k_x, (2, 4, 16, 16), dtype=jnp.float32, minval=0.1, maxval=2.0
    )
    out = jax.block_until_ready(fit_function_fdistribution(x, coefficients))
    ref = _reference(x, coefficients)
    assert out.shape == x.shape and out.dtype == x.dtype
    assert jnp.allclose(out, ref, rtol=1e-4, atol=1e-6), "mismatch vs reference (aligned)"

    # Ragged input (2*3*50 = 300 elements -> 256-element kernel prefix + 44 tail).
    x2 = jax.random.uniform(
        k_x2, (2, 3, 50), dtype=jnp.float32, minval=0.1, maxval=2.0
    )
    out2 = jax.block_until_ready(fit_function_fdistribution(x2, coefficients))
    ref2 = _reference(x2, coefficients)
    assert out2.shape == x2.shape and out2.dtype == x2.dtype
    assert jnp.allclose(out2, ref2, rtol=1e-4, atol=1e-6), "mismatch vs reference (ragged)"

    print("KERNEL_OK")
</pallas_src>

<mosaic_0001>
module attributes {stable_mosaic.version = 11 : i64} {
  func.func @_fdist_kernel(%arg0: i32, %arg1: memref<6xf32, #tpu.memory_space<smem>>, %arg2: memref<8x128xf32, #tpu.memory_space<vmem>>, %arg3: memref<8x128xf32, #tpu.memory_space<vmem>>) attributes {dimension_semantics = [#tpu.dimension_semantics<parallel>], iteration_bounds = array<i64: 2>, scalar_prefetch = 0 : i64, scratch_operands = 0 : i64, tpu.core_type = #tpu.core_type<tc>, window_params = [{transform_indices = @transform_0, window_bounds = array<i64: 6>}, {transform_indices = @transform_1, window_bounds = array<i64: 8, 128>}, {transform_indices = @transform_2, window_bounds = array<i64: 8, 128>}]} {
    %c0 = arith.constant 0 : index
    %0 = memref.load %arg1[%c0] : memref<6xf32, #tpu.memory_space<smem>>
    %c1 = arith.constant 1 : index
    %1 = memref.load %arg1[%c1] : memref<6xf32, #tpu.memory_space<smem>>
    %c2 = arith.constant 2 : index
    %2 = memref.load %arg1[%c2] : memref<6xf32, #tpu.memory_space<smem>>
    %c3 = arith.constant 3 : index
    %3 = memref.load %arg1[%c3] : memref<6xf32, #tpu.memory_space<smem>>
    %c4 = arith.constant 4 : index
    %4 = memref.load %arg1[%c4] : memref<6xf32, #tpu.memory_space<smem>>
    %c5 = arith.constant 5 : index
    %5 = memref.load %arg1[%c5] : memref<6xf32, #tpu.memory_space<smem>>
    %c0_0 = arith.constant 0 : index
    %c0_1 = arith.constant 0 : index
    %6 = vector.load %arg2[%c0_0, %c0_1] : memref<8x128xf32, #tpu.memory_space<vmem>>, vector<8x128xf32>
    %7 = math.log %6 : vector<8x128xf32>
    %8 = vector.broadcast %1 : f32 to vector<8x128xf32>
    %9 = arith.mulf %8, %6 : vector<8x128xf32>
    %10 = vector.broadcast %2 : f32 to vector<8x128xf32>
    %11 = arith.addf %9, %10 : vector<8x128xf32>
    %12 = math.log %11 : vector<8x128xf32>
    %13 = vector.broadcast %4 : f32 to vector<8x128xf32>
    %14 = arith.mulf %13, %7 : vector<8x128xf32>
    %15 = vector.broadcast %3 : f32 to vector<8x128xf32>
    %16 = arith.addf %15, %14 : vector<8x128xf32>
    %17 = vector.broadcast %5 : f32 to vector<8x128xf32>
    %18 = arith.mulf %17, %12 : vector<8x128xf32>
    %19 = arith.subf %16, %18 : vector<8x128xf32>
    %20 = math.exp %19 : vector<8x128xf32>
    %21 = vector.broadcast %0 : f32 to vector<8x128xf32>
    %22 = arith.mulf %21, %20 : vector<8x128xf32>
    %c0_2 = arith.constant 0 : index
    %c0_3 = arith.constant 0 : index
    %23 = vector.load %arg3[%c0_2, %c0_3] : memref<8x128xf32, #tpu.memory_space<vmem>>, vector<8x128xf32>
    tpu.vector_store %arg3[%c0_2, %c0_3], %22 {strides = array<i32>} : memref<8x128xf32, #tpu.memory_space<vmem>>, vector<8x128xf32>,
    return
  }
  func.func @transform_0(%arg0: i32) -> i32 {
    %c0_i32 = arith.constant 0 : i32
    %c0_i32_0 = arith.constant 0 : i32
    return %c0_i32 : i32
  }
  func.func @transform_1(%arg0: i32) -> (i32, i32) {
    %c0_i32 = arith.constant 0 : i32
    %c0_i32_0 = arith.constant 0 : i32
    return %arg0, %c0_i32 : i32, i32
  }
  func.func @transform_2(%arg0: i32) -> (i32, i32) {
    %c0_i32 = arith.constant 0 : i32
    %c0_i32_0 = arith.constant 0 : i32
    return %arg0, %c0_i32 : i32, i32
  }
}

</mosaic_0001>

<llo_original>
// kernel: tpu_custom_call.1
$region0: #{tpu_custom_call.1}
  #allocation0 [shape = 'u32[]', space=smem, size = 0x4, offset = 0x4, fixed_abs, tag = 'smem constant byte address 0x4 - core index']
  #allocation1 [shape = 'u32[144,128]{1,0:T(1,128)}', space=vmem, size = 0x12000, scoped, tag = 'internal scratch']
  %s0 = inlined_call_operand.hbm [shape: f32[6], index: 0, kind: input, shape index: {}]
  %s1 = inlined_call_operand.hbm [shape: f32[16,128], index: 1, kind: input, shape index: {}]
  %s2 = inlined_call_operand.hbm [shape: f32[16,128], index: 2, kind: output, shape index: {}]
  %s3 = sld [smem:[#allocation0]]
  $region49: #{tpu_custom_call.1} parent=0
    _
  %s5 = ssub.s32 1, %s3
  %s6 = scalar_select 0, %s5, %s3
  $region1: #{tpu_custom_call.1} parent=0
    #allocation2 [shape = 'u8[512]{0}', space=smem, size = 0x200, scoped, tag = 'input window, operand 0, single buffered']
    #allocation3 [shape = 's32[2]{0}', space=sflag, size = 0x8, scoped, tag = 'scoped memory for tpu_custom_call.1']
    #allocation4 [shape = 's32[2]{0}', space=sflag, size = 0x8, scoped, tag = 'scoped memory for tpu_custom_call.1']
    #allocation5 [shape = 's32[2]{0}', space=sflag, size = 0x8, scoped, tag = 'scoped memory for tpu_custom_call.1']
    #allocation6 [shape = 'u8[8192]{0}', space=vmem, size = 0x2000, scoped, tag = 'input window, operand 1']
    #allocation7 [shape = 'u8[8192]{0}', space=vmem, size = 0x2000, scoped, tag = 'output window, operand 0']
    %7 = vsyncpa [#allocation5], 0
    %8 = vsyncpa [#allocation3], 0
    %s9 = scalar_lea.sflag [#allocation3], 1
    %10 = vsyncpa %s9, 0
    %11 = vsyncpa [#allocation4], 0
    %s12 = scalar_lea.sflag [#allocation4], 1
    %13 = vsyncpa %s12, 0
    loop: start=0, step=1, limit=4
    $region2: #{tpu_custom_call.1} parent=1 // loop_pre_header
      _
    $region3: #{tpu_custom_call.1} parent=1 // loop_header
      %s15 = sphi 0, %s19
      %p16 = scmp.ge.s32.totalorder %s15, 4
      %s23 = sphi 0, %s23
      %s25 = sphi 0, %s23
      %s26 = sphi 0, %s25
      %s40 = sphi 0, %s26
      %s46 = sphi 0, %s48
      %s49 = sphi 0, %s46
      %s50 = sphi 0, %s49
      %s66 = sphi 0, %s50
      %s72 = sphi 0, %s74
      %s75 = sphi 0, %s72
      %s76 = sphi 0, %s75
      %s92 = sphi 0, %s76
    $region4: #{tpu_custom_call.1} parent=1 // loop_header_branch
      %18 = sbr.rel (%p16) target = $region8
    $region5: #{tpu_custom_call.1} parent=1 // loop_body
      %s20 = ssub.s32 %s15, 1
      %s21 = ssub.s32 %s15, 2
      %s22 = sadd.s32 %s15, 1
      %s24 = sadd.s32 %s23, 1
      %p27 = scmp.eq.s32.totalorder %s15, 1
      %p28 = scmp.ne.s32.totalorder %s23, %s25
      %p29 = scmp.eq.s32.totalorder %s15, 0
      %p30 = por %p28, %p29
      %p31 = scmp.ne.s32.totalorder %s23, %s25
      %p32 = scmp.eq.s32.totalorder %s20, 1
      %p33 = por %p31, %p32
      %p34 = scmp.ne.s32.totalorder %s25, %s26
      %p35 = scmp.eq.s32.totalorder %s20, 0
      %p36 = por %p34, %p35
      %p37 = scmp.ne.s32.totalorder %s25, %s26
      %p38 = scmp.eq.s32.totalorder %s21, 1
      %p39 = por %p37, %p38
      %p41 = scmp.ne.s32.totalorder %s26, %s40
      %p42 = scmp.eq.s32.totalorder %s21, 0
      %p43 = por %p41, %p42
      %s44 = ssub.s32 %s15, %s22
      %p45 = scmp.eq.s32.totalorder %s44, 0
      %s47 = sadd.s32 %s46, 1
      %s48 = scalar_select %p45, %s46, %s47
      %p51 = pneg %p45
      %p52 = scmp.eq.s32.totalorder %s15, 1
      %p53 = por %p51, %p52
      %p54 = scmp.ne.s32.totalorder %s46, %s49
      %p55 = scmp.eq.s32.totalorder %s15, 0
      %p56 = por %p54, %p55
      %p57 = scmp.ne.s32.totalorder %s46, %s49
      %p58 = scmp.eq.s32.totalorder %s20, 1
      %p59 = por %p57, %p58
      %p60 = scmp.ne.s32.totalorder %s49, %s50
      %p61 = scmp.eq.s32.totalorder %s20, 0
      %p62 = por %p60, %p61
      %p63 = scmp.ne.s32.totalorder %s49, %s50
      %p64 = scmp.eq.s32.totalorder %s21, 1
      %p65 = por %p63, %p64
      %p67 = scmp.ne.s32.totalorder %s50, %s66
      %p68 = scmp.eq.s32.totalorder %s21, 0
      %p69 = por %p67, %p68
      %s70 = ssub.s32 %s15, %s22
      %p71 = scmp.eq.s32.totalorder %s70, 0
      %s73 = sadd.s32 %s72, 1
      %s74 = scalar_select %p71, %s72, %s73
      %p77 = pneg %p71
      %p78 = scmp.eq.s32.totalorder %s15, 1
      %p79 = por %p77, %p78
      %p80 = scmp.ne.s32.totalorder %s72, %s75
      %p81 = scmp.eq.s32.totalorder %s15, 0
      %p82 = por %p80, %p81
      %p83 = scmp.ne.s32.totalorder %s72, %s75
      %p84 = scmp.eq.s32.totalorder %s20, 1
      %p85 = por %p83, %p84
      %p86 = scmp.ne.s32.totalorder %s75, %s76
      %p87 = scmp.eq.s32.totalorder %s20, 0
      %p88 = por %p86, %p87
      %p89 = scmp.ne.s32.totalorder %s75, %s76
      %p90 = scmp.eq.s32.totalorder %s21, 1
      %p91 = por %p89, %p90
      %p93 = scmp.ne.s32.totalorder %s76, %s92
      %p94 = scmp.eq.s32.totalorder %s21, 0
      %p95 = por %p93, %p94
      %p96 = scmp.le.s32.totalorder 1, %s15
      %p97 = scmp.lt.s32.totalorder %s15, 3
      %p98 = pnand %p96, %p97
      %p99 = pneg %p98
      // Predicated region
      $region9: #{tpu_custom_call.1} parent=5 // pred_check
        _
      $region10: #{tpu_custom_call.1} parent=5 // pred_check_branch
        %101 = sbr.rel (%p98) target = $region12
      $region11: #{tpu_custom_call.1} parent=5 // pred_region
        %s102 = ssub.s32 %s15, 1
        // Predicated region
        $region13: #{tpu_custom_call.1} parent=11 // pred_check
          %p103 = pneg %p36
        $region14: #{tpu_custom_call.1} parent=11 // pred_check_branch
          %105 = sbr.rel (%p103) target = $region16
        $region15: #{tpu_custom_call.1} parent=11 // pred_region
          %s107 = ssub.s32 16, 16
          %108 = vsyncadd [#allocation5], %s107
          %111 = dma.hbm_to_smem %s0, 16, [#allocation2], [#allocation5]
        $region16: #{tpu_custom_call.1} parent=11 // pred_fallthru
          _
      $region12: #{tpu_custom_call.1} parent=5 // pred_fallthru
        _
      %p112 = scmp.lt.s32.totalorder %s15, 2
      // Predicated region
      $region17: #{tpu_custom_call.1} parent=5 // pred_check
        %p113 = pneg %p112
      $region18: #{tpu_custom_call.1} parent=5 // pred_check_branch
        %115 = sbr.rel (%p113) target = $region20
      $region19: #{tpu_custom_call.1} parent=5 // pred_region
        // Predicated region
        $region21: #{tpu_custom_call.1} parent=19 // pred_check
          %p116 = pneg %p56
        $region22: #{tpu_custom_call.1} parent=19 // pred_check_branch
          %118 = sbr.rel (%p116) target = $region24
        $region23: #{tpu_custom_call.1} parent=19 // pred_region
          %s119 = sand.u32 %s46, 1
          %s120 = scalar_lea.sflag [#allocation3], %s119
          %s121 = sand.u32 %s46, 1
          %s122 = smul.addr %s121, 8
          %s123 = scalar_lea.vmem [#allocation6], %s122
          %s125 = ssub.s32 128, 128
          %126 = vsyncadd %s120, %s125
          %s127 = smul.addr %s15, 128
          %s128 = scalar_lea.hbm %s1, %s127
          %s130 = sshll.u32 %s123, 4
          %s131 = int_to_ptr.vmem [resolvable:$true] %s130
          %133 = dma.hbm_to_vmem [thread:$0]  %s128, 128, %s131, %s120
        $region24: #{tpu_custom_call.1} parent=19 // pred_fallthru
          _
      $region20: #{tpu_custom_call.1} parent=5 // pred_fallthru
        _
      %p134 = scmp.le.s32.totalorder 1, %s15
      %p135 = scmp.lt.s32.totalorder %s15, 3
      %p136 = pnand %p134, %p135
      %p137 = pneg %p136
      // Predicated region
      $region25: #{tpu_custom_call.1} parent=5 // pred_check
        _
      $region26: #{tpu_custom_call.1} parent=5 // pred_check_branch
        %139 = sbr.rel (%p136) target = $region28
      $region27: #{tpu_custom_call.1} parent=5 // pred_region
        %s140 = ssub.s32 %s15, 1
        // Predicated region
        $region29: #{tpu_custom_call.1} parent=27 // pred_check
          %p141 = pneg %p36
        $region30: #{tpu_custom_call.1} parent=27 // pred_check_branch
          %143 = sbr.rel (%p141) target = $region32
        $region31: #{tpu_custom_call.1} parent=27 // pred_region
          %144 = dma.done [#allocation5], 16
        $region32: #{tpu_custom_call.1} parent=27 // pred_fallthru
          _
        %s145 = sand.u32 %s49, 1
        %s146 = scalar_lea.sflag [#allocation3], %s145
        %s147 = sand.u32 %s49, 1
        %s148 = smul.addr %s147, 8
        %s149 = scalar_lea.vmem [#allocation6], %s148
        // Predicated region
        $region33: #{tpu_custom_call.1} parent=27 // pred_check
          %p150 = pneg %p62
        $region34: #{tpu_custom_call.1} parent=27 // pred_check_branch
          %152 = sbr.rel (%p150) target = $region36
        $region35: #{tpu_custom_call.1} parent=27 // pred_region
          %153 = dma.done %s146, 128
        $region36: #{tpu_custom_call.1} parent=27 // pred_fallthru
          _
        %154 = sfence
        %p155 = pneg %p36
        %p156 = pneg %p33
        %s157 = sand.u32 %s49, 1
        %s158 = scalar_lea.sflag [#allocation3], %s157
        %s159 = sand.u32 %s49, 1
        %s160 = smul.addr %s159, 8
        %s161 = scalar_lea.vmem [#allocation6], %s160
        %p162 = pneg %p62
        %p163 = pneg %p59
        %p164 = pneg %p88
        %p165 = pneg %p85
        %s166 = sand.u32 %s75, 1
        %s167 = scalar_lea.sflag [#allocation4], %s166
        %s168 = sand.u32 %s75, 1
        %s169 = smul.addr %s168, 8
        %s170 = scalar_lea.vmem [#allocation7], %s169
        %s171 = sld [smem:[#allocation2]]
        %s172 = sld [smem:[#allocation2 + $0x1]]
        %s173 = sld [smem:[#allocation2 + $0x2]]
        %s174 = sld [smem:[#allocation2 + $0x3]]
        %s175 = sld [smem:[#allocation2 + $0x4]]
        %s176 = sld [smem:[#allocation2 + $0x5]]
        %v177 = vld [vmem:[%s149] sm:$0xff]
        %v178 = vlog2.pop %v177
        %v179 = vmul.f32 %v178, 0.6931472
        %v180 = vstv %s172
        %v181 = vmul.f32 %v180, %v177
        %v182 = vstv %s173
        %v183 = vadd.f32 %v181, %v182
        %v184 = vlog2.pop %v183
        %v185 = vmul.f32 %v184, 0.6931472
        %v186 = vstv %s175
        %v187 = vmul.f32 %v186, %v179
        %v188 = vstv %s174
        %v189 = vadd.f32 %v188, %v187
        %v190 = vstv %s176
        %v191 = vmul.f32 %v190, %v185
        %v192 = vsub.f32 %v189, %v191
        %v193 = vmul.f32 %v192, 1.442695
        %v194 = vpow.pop %v193
        %v195 = vstv %s171
        %v196 = vmul.f32 %v195, %v194
        %197 = vst [vmem:[%s170] sm:$0xff] %v196
        %s198 = sand.u32 %s75, 1
        %s199 = scalar_lea.sflag [#allocation4], %s198
        %s200 = sand.u32 %s75, 1
        %s201 = smul.addr %s200, 8
        %s202 = scalar_lea.vmem [#allocation7], %s201
        // Predicated region
        $region37: #{tpu_custom_call.1} parent=27 // pred_check
          %p203 = pneg %p85
        $region38: #{tpu_custom_call.1} parent=27 // pred_check_branch
          %205 = sbr.rel (%p203) target = $region40
        $region39: #{tpu_custom_call.1} parent=27 // pred_region
          %s207 = ssub.s32 128, 128
          %208 = vsyncadd %s199, %s207
          %s209 = smul.addr %s20, 128
          %s210 = scalar_lea.hbm %s2, %s209
          %s212 = sshll.u32 %s202, 4
          %s213 = int_to_ptr.vmem [resolvable:$true] %s212
          %215 = dma.vmem_to_hbm [thread:$0]  %s213, 128, %s210, %s199
        $region40: #{tpu_custom_call.1} parent=27 // pred_fallthru
          _
      $region28: #{tpu_custom_call.1} parent=5 // pred_fallthru
        _
      %p216 = scmp.le.s32.totalorder 2, %s15
      // Predicated region
      $region41: #{tpu_custom_call.1} parent=5 // pred_check
        %p217 = pneg %p216
      $region42: #{tpu_custom_call.1} parent=5 // pred_check_branch
        %219 = sbr.rel (%p217) target = $region44
      $region43: #{tpu_custom_call.1} parent=5 // pred_region
        %s220 = ssub.s32 %s15, 2
        // Predicated region
        $region45: #{tpu_custom_call.1} parent=43 // pred_check
          %p221 = pneg %p91
        $region46: #{tpu_custom_call.1} parent=43 // pred_check_branch
          %223 = sbr.rel (%p221) target = $region48
        $region47: #{tpu_custom_call.1} parent=43 // pred_region
          %s224 = sand.u32 %s76, 1
          %s225 = scalar_lea.sflag [#allocation4], %s224
          %s226 = sand.u32 %s76, 1
          %s227 = smul.addr %s226, 8
          %s228 = scalar_lea.vmem [#allocation7], %s227
          %229 = dma.done %s225, 128
        $region48: #{tpu_custom_call.1} parent=43 // pred_fallthru
          _
      $region44: #{tpu_custom_call.1} parent=5 // pred_fallthru
        _
    $region6: #{tpu_custom_call.1} parent=1 // loop_footer
      %s19 = sadd.s32 1, %s15
    $region7: #{tpu_custom_call.1} parent=1 // loop_footer_branch
      %14 = sbr.rel target = $region3
    $region8: #{tpu_custom_call.1} parent=1 // loop_exit
      _
    %230 = vsyncpa [#allocation3], 1
    %s231 = scalar_lea.sflag [#allocation3], 1
    %232 = vsyncpa %s231, 1
    %233 = vsyncpa [#allocation4], 1
    %s234 = scalar_lea.sflag [#allocation4], 1
    %235 = vsyncpa %s234, 1
    %236 = vsyncpa [#allocation5], 1
    %s237 = scalar_lea.sflag [#allocation5], 1
    %238 = vsyncpa %s237, 1

</llo_original>
